<compile_context>
chip_gen: v6e
topology: v6e:2x2x1
jax: 0.10.0
libtpu: 0.0.40
codegen_flags: <defaults>
</compile_context>

<pallas_src>
import jax
import jax.numpy as jnp
from jax.experimental import pallas as pl
from jax.experimental.pallas import tpu as pltpu

FEAT_PAD = 8          # sublane padding for the feature axis (f32 sublane granule)
LANE = 128            # lane width; batch is padded to a multiple of this
MAX_LANE_TILE = 8192  # max batch lanes per grid step (8*8192*4 B = 256 KiB/buffer)
OUT_DIM = 2

LAYER_ORDER = ("hidden1", "hidden2", "hidden3", "output")
LAYER_SIZES = {
    "hidden1": (3, 2),
    "hidden2": (2, 3),
    "hidden3": (3, 2),
    "output": (2, 2),
}
# (fan_in, fan_out, apply_sigmoid) in forward order.
LAYER_SPECS = tuple(LAYER_SIZES[n] + ((n != "output"),) for n in LAYER_ORDER)
NUM_PARAMS = sum(fi * fo + fo for fi, fo, _ in LAYER_SPECS)   # 31
PARAMS_PAD = -(-NUM_PARAMS // 8) * 8                          # 32


def _round_up(n, m):
    return -(-n // m) * m


def _sigmoid(x):
    # exp rides the EUP slot; exact f32 divide (only <=3 feature rows, negligible).
    return 1.0 / (1.0 + jnp.exp(-x))


def mlp_kernel(p_ref, x_ref, o_ref):
    """p_ref: (32,) f32 in SMEM -- flat weights+biases (all indices static).
    x_ref: (8, TB) f32 in VMEM -- feature rows 0..2 valid, batch along lanes.
    o_ref: (2, TB) f32 in VMEM -- output feature rows, batch along lanes.
    """
    # Load the 3 valid input feature rows (each (1, TB)); padded rows are never read.
    h = [x_ref[i:i + 1, :] for i in range(LAYER_SPECS[0][0])]

    off = 0
    for fan_in, fan_out, act in LAYER_SPECS:   # statically unrolled
        new_h = []
        for j in range(fan_out):
            # y_j = sum_i W[i, j] * h_i + b_j : scalar-broadcast FMAs on the VPU.
            acc = h[0] * p_ref[off + j]
            for i in range(1, fan_in):
                acc = acc + h[i] * p_ref[off + i * fan_out + j]
            acc = acc + p_ref[off + fan_in * fan_out + j]
            new_h.append(_sigmoid(acc) if act else acc)
        h = new_h
        off += fan_in * fan_out + fan_out

    for j in range(OUT_DIM):
        o_ref[j:j + 1, :] = h[j]


def pack_params(params):
    """One-time flattening of all layer weights/biases into a (32,) f32 array.

    Per-layer order: row-major W (fan_in, fan_out), then b (fan_out,). Done once
    at init so the per-call path ships a few hundred SMEM bytes, not padded
    128x128 weight matrices.
    """
    pieces = []
    for name in LAYER_ORDER:
        w, b = params[name]
        pieces.append(jnp.ravel(w.astype(jnp.float32)))
        pieces.append(b.astype(jnp.float32))
    flat = jnp.concatenate(pieces)
    return jnp.pad(flat, (0, PARAMS_PAD - flat.shape[0]))


def _choose_lane_tile(b_pad):
    """Pick the lane tile so v7x gets >= 2 grid steps whenever b_pad allows."""
    if b_pad <= LANE:
        return b_pad, b_pad
    tb = min(MAX_LANE_TILE, _round_up(-(-b_pad // 2), LANE))
    return tb, _round_up(b_pad, tb)


@jax.jit
def multilayer_nn_forward(x, params_flat):
    """x: (3,) or (B, 3) f32.  Returns (2,) or (B, 2)."""
    squeeze = x.ndim == 1
    x2d = x.reshape(1, -1) if squeeze else x
    B, F = x2d.shape

    b_pad = _round_up(max(B, 1), LANE)
    tb, b_pad = _choose_lane_tile(b_pad)
    grid = (b_pad // tb,)

    # Transposed, padded input: features along sublanes, batch along lanes.
    # (8, b_pad) is ~16x smaller than the old (b_pad, 128) HBM staging array.
    # TODO(synk): the transpose/pad could move in-kernel (block (tb, 3) input)
    # to drop this small XLA staging op entirely.
    xt = jnp.zeros((FEAT_PAD, b_pad), dtype=jnp.float32)
    xt = xt.at[:F, :B].set(x2d.astype(jnp.float32).T)

    out_t = pl.pallas_call(
        mlp_kernel,
        out_shape=jax.ShapeDtypeStruct((OUT_DIM, b_pad), jnp.float32),
        grid=grid,
        in_specs=[
            pl.BlockSpec(memory_space=pltpu.MemorySpace.SMEM),  # flat params
            pl.BlockSpec((FEAT_PAD, tb), lambda i: (0, i)),
        ],
        out_specs=pl.BlockSpec((OUT_DIM, tb), lambda i: (0, i)),
        compiler_params=pltpu.CompilerParams(
            dimension_semantics=("parallel",)),
    )(params_flat, xt)

    out = out_t[:, :B].T
    return out[0] if squeeze else out


def _init_params(key):
    """Deterministic init mimicking nn.Linear's U(-1/sqrt(fan_in), 1/sqrt(fan_in))."""
    params = {}
    for name in LAYER_ORDER:
        fan_in, fan_out = LAYER_SIZES[name]
        key, kw, kb = jax.random.split(key, 3)
        bound = 1.0 / jnp.sqrt(fan_in)
        # stored as (in, out) so the forward computes x @ W + b
        w = jax.random.uniform(kw, (fan_in, fan_out), jnp.float32, -bound, bound)
        b = jax.random.uniform(kb, (fan_out,), jnp.float32, -bound, bound)
        params[name] = (w, b)
    return params


def _reference(x, params):
    h = x.reshape(1, -1) if x.ndim == 1 else x
    for name in ("hidden1", "hidden2", "hidden3"):
        w, b = params[name]
        h = jax.nn.sigmoid(h @ w + b)
    w, b = params["output"]
    out = h @ w + b
    return out[0] if x.ndim == 1 else out


if __name__ == "__main__":
    key = jax.random.PRNGKey(0)
    params = _init_params(key)

    # One-time packing (hoisted out of the per-call path).
    params_flat = jax.block_until_ready(pack_params(params))

    # Same input as the PyTorch snippet: x = [1.0, 2.0, 3.0]
    x = jnp.array([1.0, 2.0, 3.0], dtype=jnp.float32)
    out = jax.block_until_ready(multilayer_nn_forward(x, params_flat))
    ref = _reference(x, params)
    assert out.shape == (2,), out.shape
    assert jnp.allclose(out, ref, atol=1e-5, rtol=1e-5), (out, ref)

    # Small batch: single lane tile, grid collapses to (1,).
    xb = jax.random.normal(jax.random.PRNGKey(1), (16, 3), dtype=jnp.float32)
    outb = jax.block_until_ready(multilayer_nn_forward(xb, params_flat))
    refb = _reference(xb, params)
    assert outb.shape == (16, 2), outb.shape
    assert jnp.allclose(outb, refb, atol=1e-5, rtol=1e-5)

    # Larger batch: exercises the multi-step "parallel" grid path (grid=(2,)).
    xl = jax.random.normal(jax.random.PRNGKey(2), (300, 3), dtype=jnp.float32)
    outl = jax.block_until_ready(multilayer_nn_forward(xl, params_flat))
    refl = _reference(xl, params)
    assert outl.shape == (300, 2), outl.shape
    assert jnp.allclose(outl, refl, atol=1e-5, rtol=1e-5)

    print("KERNEL_OK")
</pallas_src>

<mosaic_0001>
module attributes {stable_mosaic.version = 11 : i64} {
  func.func @mlp_kernel(%arg0: i32, %arg1: memref<32xf32, #tpu.memory_space<smem>>, %arg2: memref<8x128xf32, #tpu.memory_space<vmem>>, %arg3: memref<2x128xf32, #tpu.memory_space<vmem>>) attributes {dimension_semantics = [#tpu.dimension_semantics<parallel>], iteration_bounds = array<i64: 1>, scalar_prefetch = 0 : i64, scratch_operands = 0 : i64, tpu.core_type = #tpu.core_type<tc>, window_params = [{transform_indices = @transform_0, window_bounds = array<i64: 32>}, {transform_indices = @transform_1, window_bounds = array<i64: 8, 128>}, {transform_indices = @transform_2, window_bounds = array<i64: 2, 128>}]} {
    %c0 = arith.constant 0 : index
    %c0_0 = arith.constant 0 : index
    %0 = vector.load %arg2[%c0, %c0_0] : memref<8x128xf32, #tpu.memory_space<vmem>>, vector<1x128xf32>
    %c1 = arith.constant 1 : index
    %c0_1 = arith.constant 0 : index
    %1 = vector.load %arg2[%c1, %c0_1] : memref<8x128xf32, #tpu.memory_space<vmem>>, vector<1x128xf32>
    %c2 = arith.constant 2 : index
    %c0_2 = arith.constant 0 : index
    %2 = vector.load %arg2[%c2, %c0_2] : memref<8x128xf32, #tpu.memory_space<vmem>>, vector<1x128xf32>
    %c0_3 = arith.constant 0 : index
    %3 = memref.load %arg1[%c0_3] : memref<32xf32, #tpu.memory_space<smem>>
    %4 = vector.broadcast %3 : f32 to vector<1x128xf32>
    %5 = arith.mulf %0, %4 : vector<1x128xf32>
    %c2_4 = arith.constant 2 : index
    %6 = memref.load %arg1[%c2_4] : memref<32xf32, #tpu.memory_space<smem>>
    %7 = vector.broadcast %6 : f32 to vector<1x128xf32>
    %8 = arith.mulf %1, %7 : vector<1x128xf32>
    %9 = arith.addf %5, %8 : vector<1x128xf32>
    %c4 = arith.constant 4 : index
    %10 = memref.load %arg1[%c4] : memref<32xf32, #tpu.memory_space<smem>>
    %11 = vector.broadcast %10 : f32 to vector<1x128xf32>
    %12 = arith.mulf %2, %11 : vector<1x128xf32>
    %13 = arith.addf %9, %12 : vector<1x128xf32>
    %c6 = arith.constant 6 : index
    %14 = memref.load %arg1[%c6] : memref<32xf32, #tpu.memory_space<smem>>
    %15 = vector.broadcast %14 : f32 to vector<1x128xf32>
    %16 = arith.addf %13, %15 : vector<1x128xf32>
    %cst = arith.constant 0.000000e+00 : f32
    %17 = vector.broadcast %cst : f32 to vector<1x128xf32>
    %18 = arith.subf %17, %16 : vector<1x128xf32>
    %19 = math.exp %18 : vector<1x128xf32>
    %cst_5 = arith.constant 1.000000e+00 : f32
    %20 = vector.broadcast %cst_5 : f32 to vector<1x128xf32>
    %21 = arith.addf %20, %19 : vector<1x128xf32>
    %cst_6 = arith.constant 1.000000e+00 : f32
    %22 = vector.broadcast %cst_6 : f32 to vector<1x128xf32>
    %23 = arith.divf %22, %21 : vector<1x128xf32>
    %c1_7 = arith.constant 1 : index
    %24 = memref.load %arg1[%c1_7] : memref<32xf32, #tpu.memory_space<smem>>
    %25 = vector.broadcast %24 : f32 to vector<1x128xf32>
    %26 = arith.mulf %0, %25 : vector<1x128xf32>
    %c3 = arith.constant 3 : index
    %27 = memref.load %arg1[%c3] : memref<32xf32, #tpu.memory_space<smem>>
    %28 = vector.broadcast %27 : f32 to vector<1x128xf32>
    %29 = arith.mulf %1, %28 : vector<1x128xf32>
    %30 = arith.addf %26, %29 : vector<1x128xf32>
    %c5 = arith.constant 5 : index
    %31 = memref.load %arg1[%c5] : memref<32xf32, #tpu.memory_space<smem>>
    %32 = vector.broadcast %31 : f32 to vector<1x128xf32>
    %33 = arith.mulf %2, %32 : vector<1x128xf32>
    %34 = arith.addf %30, %33 : vector<1x128xf32>
    %c7 = arith.constant 7 : index
    %35 = memref.load %arg1[%c7] : memref<32xf32, #tpu.memory_space<smem>>
    %36 = vector.broadcast %35 : f32 to vector<1x128xf32>
    %37 = arith.addf %34, %36 : vector<1x128xf32>
    %cst_8 = arith.constant 0.000000e+00 : f32
    %38 = vector.broadcast %cst_8 : f32 to vector<1x128xf32>
    %39 = arith.subf %38, %37 : vector<1x128xf32>
    %40 = math.exp %39 : vector<1x128xf32>
    %cst_9 = arith.constant 1.000000e+00 : f32
    %41 = vector.broadcast %cst_9 : f32 to vector<1x128xf32>
    %42 = arith.addf %41, %40 : vector<1x128xf32>
    %cst_10 = arith.constant 1.000000e+00 : f32
    %43 = vector.broadcast %cst_10 : f32 to vector<1x128xf32>
    %44 = arith.divf %43, %42 : vector<1x128xf32>
    %c8 = arith.constant 8 : index
    %45 = memref.load %arg1[%c8] : memref<32xf32, #tpu.memory_space<smem>>
    %46 = vector.broadcast %45 : f32 to vector<1x128xf32>
    %47 = arith.mulf %23, %46 : vector<1x128xf32>
    %c11 = arith.constant 11 : index
    %48 = memref.load %arg1[%c11] : memref<32xf32, #tpu.memory_space<smem>>
    %49 = vector.broadcast %48 : f32 to vector<1x128xf32>
    %50 = arith.mulf %44, %49 : vector<1x128xf32>
    %51 = arith.addf %47, %50 : vector<1x128xf32>
    %c14 = arith.constant 14 : index
    %52 = memref.load %arg1[%c14] : memref<32xf32, #tpu.memory_space<smem>>
    %53 = vector.broadcast %52 : f32 to vector<1x128xf32>
    %54 = arith.addf %51, %53 : vector<1x128xf32>
    %cst_11 = arith.constant 0.000000e+00 : f32
    %55 = vector.broadcast %cst_11 : f32 to vector<1x128xf32>
    %56 = arith.subf %55, %54 : vector<1x128xf32>
    %57 = math.exp %56 : vector<1x128xf32>
    %cst_12 = arith.constant 1.000000e+00 : f32
    %58 = vector.broadcast %cst_12 : f32 to vector<1x128xf32>
    %59 = arith.addf %58, %57 : vector<1x128xf32>
    %cst_13 = arith.constant 1.000000e+00 : f32
    %60 = vector.broadcast %cst_13 : f32 to vector<1x128xf32>
    %61 = arith.divf %60, %59 : vector<1x128xf32>
    %c9 = arith.constant 9 : index
    %62 = memref.load %arg1[%c9] : memref<32xf32, #tpu.memory_space<smem>>
    %63 = vector.broadcast %62 : f32 to vector<1x128xf32>
    %64 = arith.mulf %23, %63 : vector<1x128xf32>
    %c12 = arith.constant 12 : index
    %65 = memref.load %arg1[%c12] : memref<32xf32, #tpu.memory_space<smem>>
    %66 = vector.broadcast %65 : f32 to vector<1x128xf32>
    %67 = arith.mulf %44, %66 : vector<1x128xf32>
    %68 = arith.addf %64, %67 : vector<1x128xf32>
    %c15 = arith.constant 15 : index
    %69 = memref.load %arg1[%c15] : memref<32xf32, #tpu.memory_space<smem>>
    %70 = vector.broadcast %69 : f32 to vector<1x128xf32>
    %71 = arith.addf %68, %70 : vector<1x128xf32>
    %cst_14 = arith.constant 0.000000e+00 : f32
    %72 = vector.broadcast %cst_14 : f32 to vector<1x128xf32>
    %73 = arith.subf %72, %71 : vector<1x128xf32>
    %74 = math.exp %73 : vector<1x128xf32>
    %cst_15 = arith.constant 1.000000e+00 : f32
    %75 = vector.broadcast %cst_15 : f32 to vector<1x128xf32>
    %76 = arith.addf %75, %74 : vector<1x128xf32>
    %cst_16 = arith.constant 1.000000e+00 : f32
    %77 = vector.broadcast %cst_16 : f32 to vector<1x128xf32>
    %78 = arith.divf %77, %76 : vector<1x128xf32>
    %c10 = arith.constant 10 : index
    %79 = memref.load %arg1[%c10] : memref<32xf32, #tpu.memory_space<smem>>
    %80 = vector.broadcast %79 : f32 to vector<1x128xf32>
    %81 = arith.mulf %23, %80 : vector<1x128xf32>
    %c13 = arith.constant 13 : index
    %82 = memref.load %arg1[%c13] : memref<32xf32, #tpu.memory_space<smem>>
    %83 = vector.broadcast %82 : f32 to vector<1x128xf32>
    %84 = arith.mulf %44, %83 : vector<1x128xf32>
    %85 = arith.addf %81, %84 : vector<1x128xf32>
    %c16 = arith.constant 16 : index
    %86 = memref.load %arg1[%c16] : memref<32xf32, #tpu.memory_space<smem>>
    %87 = vector.broadcast %86 : f32 to vector<1x128xf32>
    %88 = arith.addf %85, %87 : vector<1x128xf32>
    %cst_17 = arith.constant 0.000000e+00 : f32
    %89 = vector.broadcast %cst_17 : f32 to vector<1x128xf32>
    %90 = arith.subf %89, %88 : vector<1x128xf32>
    %91 = math.exp %90 : vector<1x128xf32>
    %cst_18 = arith.constant 1.000000e+00 : f32
    %92 = vector.broadcast %cst_18 : f32 to vector<1x128xf32>
    %93 = arith.addf %92, %91 : vector<1x128xf32>
    %cst_19 = arith.constant 1.000000e+00 : f32
    %94 = vector.broadcast %cst_19 : f32 to vector<1x128xf32>
    %95 = arith.divf %94, %93 : vector<1x128xf32>
    %c17 = arith.constant 17 : index
    %96 = memref.load %arg1[%c17] : memref<32xf32, #tpu.memory_space<smem>>
    %97 = vector.broadcast %96 : f32 to vector<1x128xf32>
    %98 = arith.mulf %61, %97 : vector<1x128xf32>
    %c19 = arith.constant 19 : index
    %99 = memref.load %arg1[%c19] : memref<32xf32, #tpu.memory_space<smem>>
    %100 = vector.broadcast %99 : f32 to vector<1x128xf32>
    %101 = arith.mulf %78, %100 : vector<1x128xf32>
    %102 = arith.addf %98, %101 : vector<1x128xf32>
    %c21 = arith.constant 21 : index
    %103 = memref.load %arg1[%c21] : memref<32xf32, #tpu.memory_space<smem>>
    %104 = vector.broadcast %103 : f32 to vector<1x128xf32>
    %105 = arith.mulf %95, %104 : vector<1x128xf32>
    %106 = arith.addf %102, %105 : vector<1x128xf32>
    %c23 = arith.constant 23 : index
    %107 = memref.load %arg1[%c23] : memref<32xf32, #tpu.memory_space<smem>>
    %108 = vector.broadcast %107 : f32 to vector<1x128xf32>
    %109 = arith.addf %106, %108 : vector<1x128xf32>
    %cst_20 = arith.constant 0.000000e+00 : f32
    %110 = vector.broadcast %cst_20 : f32 to vector<1x128xf32>
    %111 = arith.subf %110, %109 : vector<1x128xf32>
    %112 = math.exp %111 : vector<1x128xf32>
    %cst_21 = arith.constant 1.000000e+00 : f32
    %113 = vector.broadcast %cst_21 : f32 to vector<1x128xf32>
    %114 = arith.addf %113, %112 : vector<1x128xf32>
    %cst_22 = arith.constant 1.000000e+00 : f32
    %115 = vector.broadcast %cst_22 : f32 to vector<1x128xf32>
    %116 = arith.divf %115, %114 : vector<1x128xf32>
    %c18 = arith.constant 18 : index
    %117 = memref.load %arg1[%c18] : memref<32xf32, #tpu.memory_space<smem>>
    %118 = vector.broadcast %117 : f32 to vector<1x128xf32>
    %119 = arith.mulf %61, %118 : vector<1x128xf32>
    %c20 = arith.constant 20 : index
    %120 = memref.load %arg1[%c20] : memref<32xf32, #tpu.memory_space<smem>>
    %121 = vector.broadcast %120 : f32 to vector<1x128xf32>
    %122 = arith.mulf %78, %121 : vector<1x128xf32>
    %123 = arith.addf %119, %122 : vector<1x128xf32>
    %c22 = arith.constant 22 : index
    %124 = memref.load %arg1[%c22] : memref<32xf32, #tpu.memory_space<smem>>
    %125 = vector.broadcast %124 : f32 to vector<1x128xf32>
    %126 = arith.mulf %95, %125 : vector<1x128xf32>
    %127 = arith.addf %123, %126 : vector<1x128xf32>
    %c24 = arith.constant 24 : index
    %128 = memref.load %arg1[%c24] : memref<32xf32, #tpu.memory_space<smem>>
    %129 = vector.broadcast %128 : f32 to vector<1x128xf32>
    %130 = arith.addf %127, %129 : vector<1x128xf32>
    %cst_23 = arith.constant 0.000000e+00 : f32
    %131 = vector.broadcast %cst_23 : f32 to vector<1x128xf32>
    %132 = arith.subf %131, %130 : vector<1x128xf32>
    %133 = math.exp %132 : vector<1x128xf32>
    %cst_24 = arith.constant 1.000000e+00 : f32
    %134 = vector.broadcast %cst_24 : f32 to vector<1x128xf32>
    %135 = arith.addf %134, %133 : vector<1x128xf32>
    %cst_25 = arith.constant 1.000000e+00 : f32
    %136 = vector.broadcast %cst_25 : f32 to vector<1x128xf32>
    %137 = arith.divf %136, %135 : vector<1x128xf32>
    %c25 = arith.constant 25 : index
    %138 = memref.load %arg1[%c25] : memref<32xf32, #tpu.memory_space<smem>>
    %139 = vector.broadcast %138 : f32 to vector<1x128xf32>
    %140 = arith.mulf %116, %139 : vector<1x128xf32>
    %c27 = arith.constant 27 : index
    %141 = memref.load %arg1[%c27] : memref<32xf32, #tpu.memory_space<smem>>
    %142 = vector.broadcast %141 : f32 to vector<1x128xf32>
    %143 = arith.mulf %137, %142 : vector<1x128xf32>
    %144 = arith.addf %140, %143 : vector<1x128xf32>
    %c29 = arith.constant 29 : index
    %145 = memref.load %arg1[%c29] : memref<32xf32, #tpu.memory_space<smem>>
    %146 = vector.broadcast %145 : f32 to vector<1x128xf32>
    %147 = arith.addf %144, %146 : vector<1x128xf32>
    %c26 = arith.constant 26 : index
    %148 = memref.load %arg1[%c26] : memref<32xf32, #tpu.memory_space<smem>>
    %149 = vector.broadcast %148 : f32 to vector<1x128xf32>
    %150 = arith.mulf %116, %149 : vector<1x128xf32>
    %c28 = arith.constant 28 : index
    %151 = memref.load %arg1[%c28] : memref<32xf32, #tpu.memory_space<smem>>
    %152 = vector.broadcast %151 : f32 to vector<1x128xf32>
    %153 = arith.mulf %137, %152 : vector<1x128xf32>
    %154 = arith.addf %150, %153 : vector<1x128xf32>
    %c30 = arith.constant 30 : index
    %155 = memref.load %arg1[%c30] : memref<32xf32, #tpu.memory_space<smem>>
    %156 = vector.broadcast %155 : f32 to vector<1x128xf32>
    %157 = arith.addf %154, %156 : vector<1x128xf32>
    %c0_26 = arith.constant 0 : index
    %c0_27 = arith.constant 0 : index
    %158 = vector.load %arg3[%c0_26, %c0_27] : memref<2x128xf32, #tpu.memory_space<vmem>>, vector<1x128xf32>
    tpu.vector_store %arg3[%c0_26, %c0_27], %147 {strides = array<i32>} : memref<2x128xf32, #tpu.memory_space<vmem>>, vector<1x128xf32>,
    %c1_28 = arith.constant 1 : index
    %c0_29 = arith.constant 0 : index
    %159 = vector.load %arg3[%c1_28, %c0_29] : memref<2x128xf32, #tpu.memory_space<vmem>>, vector<1x128xf32>
    tpu.vector_store %arg3[%c1_28, %c0_29], %157 {strides = array<i32>} : memref<2x128xf32, #tpu.memory_space<vmem>>, vector<1x128xf32>,
    return
  }
  func.func @transform_0(%arg0: i32) -> i32 {
    %c0_i32 = arith.constant 0 : i32
    %c0_i32_0 = arith.constant 0 : i32
    return %c0_i32 : i32
  }
  func.func @transform_1(%arg0: i32) -> (i32, i32) {
    %c0_i32 = arith.constant 0 : i32
    %c0_i32_0 = arith.constant 0 : i32
    return %c0_i32, %arg0 : i32, i32
  }
  func.func @transform_2(%arg0: i32) -> (i32, i32) {
    %c0_i32 = arith.constant 0 : i32
    %c0_i32_0 = arith.constant 0 : i32
    return %c0_i32, %arg0 : i32, i32
  }
}

</mosaic_0001>

<llo_original>
// kernel: multilayer_nn_forward.1
$region0: #{multilayer_nn_forward.1}
  #allocation0 [shape = 'u32[]', space=smem, size = 0x4, offset = 0x4, fixed_abs, tag = 'smem constant byte address 0x4 - core index']
  #allocation1 [shape = 'u32[144,128]{1,0:T(1,128)}', space=vmem, size = 0x12000, scoped, tag = 'internal scratch']
  %s0 = inlined_call_operand.vmem [shape: f32[32], index: 0, kind: input, shape index: {}]
  %s1 = inlined_call_operand.vmem [shape: f32[8,128], index: 1, kind: input, shape index: {}]
  %s2 = inlined_call_operand.vmem [shape: f32[2,128], index: 2, kind: output, shape index: {}]
  %s3 = sld [smem:[#allocation0]]
  $region22: #{multilayer_nn_forward.1} parent=0
    _
  %s5 = ssub.s32 1, %s3
  %s6 = scalar_select 0, %s5, %s3
  $region1: #{multilayer_nn_forward.1} parent=0
    #allocation2 [shape = 'u8[512]{0}', space=smem, size = 0x200, scoped, tag = 'input window, operand 0, single buffered']
    #allocation3 [shape = 's32[1]{0}', space=sflag, size = 0x4, scoped, tag = 'scoped memory for multilayer_nn_forward.1']
    %7 = vsyncpa [#allocation3], 0
    // Predicated region
    $region2: #{multilayer_nn_forward.1} parent=1 // pred_check
      _
    $region3: #{multilayer_nn_forward.1} parent=1 // pred_check_branch
      %9 = sbr.rel (0) target = $region5
    $region4: #{multilayer_nn_forward.1} parent=1 // pred_region
      %s11 = ssub.s32 16, 16
      %12 = vsyncadd [#allocation3], %s11
      %s14 = sshll.u32 %s0, 4
      %s15 = int_to_ptr.vmem [resolvable:$true] %s14
      %17 = dma.vmem_to_smem %s15, 16, [#allocation2], [#allocation3]
    $region5: #{multilayer_nn_forward.1} parent=1 // pred_fallthru
      _
    // Predicated region
    $region6: #{multilayer_nn_forward.1} parent=1 // pred_check
      _
    $region7: #{multilayer_nn_forward.1} parent=1 // pred_check_branch
      %19 = sbr.rel (0) target = $region9
    $region8: #{multilayer_nn_forward.1} parent=1 // pred_region
      _
    $region9: #{multilayer_nn_forward.1} parent=1 // pred_fallthru
      _
    // Predicated region
    $region10: #{multilayer_nn_forward.1} parent=1 // pred_check
      _
    $region11: #{multilayer_nn_forward.1} parent=1 // pred_check_branch
      %21 = sbr.rel (0) target = $region13
    $region12: #{multilayer_nn_forward.1} parent=1 // pred_region
      %22 = dma.done [#allocation3], 16
    $region13: #{multilayer_nn_forward.1} parent=1 // pred_fallthru
      _
    %23 = sfence
    %v24 = vld [vmem:[%s1] sm:$0x1]
    %v25 = vld [vmem:[%s1 + $0x1] sm:$0x1]
    %v26 = vld [vmem:[%s1 + $0x2] sm:$0x1]
    %s27 = sld [smem:[#allocation2]]
    %v28 = vstv %s27
    %v29 = vmul.f32 %v24, %v28
    %s30 = sld [smem:[#allocation2 + $0x2]]
    %v31 = vstv %s30
    %v32 = vmul.f32 %v25, %v31
    %v33 = vadd.f32 %v29, %v32
    %s34 = sld [smem:[#allocation2 + $0x4]]
    %v35 = vstv %s34
    %v36 = vmul.f32 %v26, %v35
    %v37 = vadd.f32 %v33, %v36
    %s38 = sld [smem:[#allocation2 + $0x6]]
    %v39 = vstv %s38
    %v40 = vadd.f32 %v37, %v39
    %v41 = vsub.f32 0.0, %v40
    %v42 = vmul.f32 %v41, 1.442695
    %v43 = vpow.pop %v42
    %v44 = vadd.f32 %v43, 1.0
    %v45 = vrcp.pop %v44
    %v46 = vmul.f32 1.0, %v45
    %s47 = sld [smem:[#allocation2 + $0x1]]
    %v48 = vstv %s47
    %v49 = vmul.f32 %v24, %v48
    %s50 = sld [smem:[#allocation2 + $0x3]]
    %v51 = vstv %s50
    %v52 = vmul.f32 %v25, %v51
    %v53 = vadd.f32 %v49, %v52
    %s54 = sld [smem:[#allocation2 + $0x5]]
    %v55 = vstv %s54
    %v56 = vmul.f32 %v26, %v55
    %v57 = vadd.f32 %v53, %v56
    %s58 = sld [smem:[#allocation2 + $0x7]]
    %v59 = vstv %s58
    %v60 = vadd.f32 %v57, %v59
    %v61 = vsub.f32 0.0, %v60
    %v62 = vmul.f32 %v61, 1.442695
    %v63 = vpow.pop %v62
    %v64 = vadd.f32 %v63, 1.0
    %v65 = vrcp.pop %v64
    %v66 = vmul.f32 1.0, %v65
    %s67 = sld [smem:[#allocation2 + $0x8]]
    %v68 = vstv %s67
    %v69 = vmul.f32 %v46, %v68
    %s70 = sld [smem:[#allocation2 + $0xb]]
    %v71 = vstv %s70
    %v72 = vmul.f32 %v66, %v71
    %v73 = vadd.f32 %v69, %v72
    %s74 = sld [smem:[#allocation2 + $0xe]]
    %v75 = vstv %s74
    %v76 = vadd.f32 %v73, %v75
    %v77 = vsub.f32 0.0, %v76
    %v78 = vmul.f32 %v77, 1.442695
    %v79 = vpow.pop %v78
    %v80 = vadd.f32 %v79, 1.0
    %v81 = vrcp.pop %v80
    %v82 = vmul.f32 1.0, %v81
    %s83 = sld [smem:[#allocation2 + $0x9]]
    %v84 = vstv %s83
    %v85 = vmul.f32 %v46, %v84
    %s86 = sld [smem:[#allocation2 + $0xc]]
    %v87 = vstv %s86
    %v88 = vmul.f32 %v66, %v87
    %v89 = vadd.f32 %v85, %v88
    %s90 = sld [smem:[#allocation2 + $0xf]]
    %v91 = vstv %s90
    %v92 = vadd.f32 %v89, %v91
    %v93 = vsub.f32 0.0, %v92
    %v94 = vmul.f32 %v93, 1.442695
    %v95 = vpow.pop %v94
    %v96 = vadd.f32 %v95, 1.0
    %v97 = vrcp.pop %v96
    %v98 = vmul.f32 1.0, %v97
    %s99 = sld [smem:[#allocation2 + $0xa]]
    %v100 = vstv %s99
    %v101 = vmul.f32 %v46, %v100
    %s102 = sld [smem:[#allocation2 + $0xd]]
    %v103 = vstv %s102
    %v104 = vmul.f32 %v66, %v103
    %v105 = vadd.f32 %v101, %v104
    %s106 = sld [smem:[#allocation2 + $0x10]]
    %v107 = vstv %s106
    %v108 = vadd.f32 %v105, %v107
    %v109 = vsub.f32 0.0, %v108
    %v110 = vmul.f32 %v109, 1.442695
    %v111 = vpow.pop %v110
    %v112 = vadd.f32 %v111, 1.0
    %v113 = vrcp.pop %v112
    %v114 = vmul.f32 1.0, %v113
    %s115 = sld [smem:[#allocation2 + $0x11]]
    %v116 = vstv %s115
    %v117 = vmul.f32 %v82, %v116
    %s118 = sld [smem:[#allocation2 + $0x13]]
    %v119 = vstv %s118
    %v120 = vmul.f32 %v98, %v119
    %v121 = vadd.f32 %v117, %v120
    %s122 = sld [smem:[#allocation2 + $0x15]]
    %v123 = vstv %s122
    %v124 = vmul.f32 %v114, %v123
    %v125 = vadd.f32 %v121, %v124
    %s126 = sld [smem:[#allocation2 + $0x17]]
    %v127 = vstv %s126
    %v128 = vadd.f32 %v125, %v127
    %v129 = vsub.f32 0.0, %v128
    %v130 = vmul.f32 %v129, 1.442695
    %v131 = vpow.pop %v130
    %v132 = vadd.f32 %v131, 1.0
    %v133 = vrcp.pop %v132
    %v134 = vmul.f32 1.0, %v133
    %s135 = sld [smem:[#allocation2 + $0x12]]
    %v136 = vstv %s135
    %v137 = vmul.f32 %v82, %v136
    %s138 = sld [smem:[#allocation2 + $0x14]]
    %v139 = vstv %s138
    %v140 = vmul.f32 %v98, %v139
    %v141 = vadd.f32 %v137, %v140
    %s142 = sld [smem:[#allocation2 + $0x16]]
    %v143 = vstv %s142
    %v144 = vmul.f32 %v114, %v143
    %v145 = vadd.f32 %v141, %v144
    %s146 = sld [smem:[#allocation2 + $0x18]]
    %v147 = vstv %s146
    %v148 = vadd.f32 %v145, %v147
    %v149 = vsub.f32 0.0, %v148
    %v150 = vmul.f32 %v149, 1.442695
    %v151 = vpow.pop %v150
    %v152 = vadd.f32 %v151, 1.0
    %v153 = vrcp.pop %v152
    %v154 = vmul.f32 1.0, %v153
    %s155 = sld [smem:[#allocation2 + $0x19]]
    %v156 = vstv %s155
    %v157 = vmul.f32 %v134, %v156
    %s158 = sld [smem:[#allocation2 + $0x1b]]
    %v159 = vstv %s158
    %v160 = vmul.f32 %v154, %v159
    %v161 = vadd.f32 %v157, %v160
    %s162 = sld [smem:[#allocation2 + $0x1d]]
    %v163 = vstv %s162
    %v164 = vadd.f32 %v161, %v163
    %s165 = sld [smem:[#allocation2 + $0x1a]]
    %v166 = vstv %s165
    %v167 = vmul.f32 %v134, %v166
    %s168 = sld [smem:[#allocation2 + $0x1c]]
    %v169 = vstv %s168
    %v170 = vmul.f32 %v154, %v169
    %v171 = vadd.f32 %v167, %v170
    %s172 = sld [smem:[#allocation2 + $0x1e]]
    %v173 = vstv %s172
    %v174 = vadd.f32 %v171, %v173
    %175 = vst [vmem:[%s2] sm:$0x1] %v164
    %176 = vst [vmem:[%s2 + $0x1] sm:$0x1] %v174
    // Predicated region
    $region14: #{multilayer_nn_forward.1} parent=1 // pred_check
      _
    $region15: #{multilayer_nn_forward.1} parent=1 // pred_check_branch
      %178 = sbr.rel (0) target = $region17
    $region16: #{multilayer_nn_forward.1} parent=1 // pred_region
      _
    $region17: #{multilayer_nn_forward.1} parent=1 // pred_fallthru
      _
    // Predicated region
    $region18: #{multilayer_nn_forward.1} parent=1 // pred_check
      _
    $region19: #{multilayer_nn_forward.1} parent=1 // pred_check_branch
      %180 = sbr.rel (0) target = $region21
    $region20: #{multilayer_nn_forward.1} parent=1 // pred_region
      _
    $region21: #{multilayer_nn_forward.1} parent=1 // pred_fallthru
      _
    %181 = vsyncpa [#allocation3], 1

</llo_original>
